<compile_context>
chip_gen: v7x
topology: tpu7x:2x2x1
jax: 0.10.0
libtpu: 0.0.40
codegen_flags: <defaults>
</compile_context>

<pallas_src>
import functools

import jax
import jax.numpy as jnp
from jax.experimental import pallas as pl
from jax.experimental.pallas import tpu as pltpu


def _round_up(x, m):
    return (x + m - 1) // m * m


def _device_kind():
    try:
        return jax.devices()[0].device_kind.lower()
    except Exception:
        return ""


def policy_mlp_kernel(x_ref, w1_ref, b1_ref, w2_ref, b2_ref, w3_ref, b3_ref,
                      out_ref, *, eltwise_dtype):
    # fc1 + tanh  (bf16 MXU inputs, f32 accumulate; tanh in eltwise_dtype).
    # K=4 is a degenerate MXU push, but the MXU is nowhere near the bottleneck;
    # a VPU broadcast-FMA formulation would only free an already-idle slot.
    h1 = jnp.tanh(
        (jnp.dot(x_ref[...].astype(jnp.bfloat16), w1_ref[...],
                 preferred_element_type=jnp.float32)
         + b1_ref[...]).astype(eltwise_dtype))
    # fc2 + tanh
    h2 = jnp.tanh(
        (jnp.dot(h1.astype(jnp.bfloat16), w2_ref[...],
                 preferred_element_type=jnp.float32)
         + b2_ref[...]).astype(eltwise_dtype))
    # fc3 + softmax (true out_dim lanes; exact divide so rows sum to 1).
    logits = (jnp.dot(h2.astype(jnp.bfloat16), w3_ref[...],
                      preferred_element_type=jnp.float32) + b3_ref[...])
    m = jnp.max(logits, axis=-1, keepdims=True)
    e = jnp.exp(logits - m)
    out_ref[...] = (e / jnp.sum(e, axis=-1, keepdims=True)).astype(out_ref.dtype)


def prepare_params(params):
    """One-time weight prep (bf16 weights for the MXU, f32 biases).

    Call once per parameter update / at init, NOT inside the rollout loop.
    """
    w1, b1, w2, b2, w3, b3 = params
    return (w1.astype(jnp.bfloat16), b1.astype(jnp.float32),
            w2.astype(jnp.bfloat16), b2.astype(jnp.float32),
            w3.astype(jnp.bfloat16), b3.astype(jnp.float32))


def _choose_tile(batch, block_batch):
    b8 = _round_up(batch, 8)
    tm = max(8, _round_up(min(block_batch, b8), 8))
    # With the narrow output, padded rows are cheap (~24 B/row of HBM plus a
    # sliver of MXU/EUP), so only shrink the tile when padding waste gets large;
    # per-grid-step overhead (~0.35 us) otherwise dominates.
    while tm > 512 and _round_up(b8, tm) - b8 > b8 // 4:
        tm = max(512, (tm // 2) // 8 * 8)
    return tm, _round_up(b8, tm)


def policy_forward(x, params, *, block_batch=2048):
    """x: [B, input_dim] float32 -> probs [B, output_dim] float32.

    `params` should come from prepare_params() (bf16 weights); raw f32 params
    are accepted and prepared on the fly (less efficient in a tight loop).
    """
    if params[0].dtype != jnp.bfloat16:
        params = prepare_params(params)
    w1, b1, w2, b2, w3, b3 = params

    B, in_dim = x.shape
    out_dim = w3.shape[1]

    tm, b_pad = _choose_tile(B, block_batch)
    if b_pad != B:
        x = jnp.pad(x, ((0, b_pad - B), (0, 0)))
    grid_steps = b_pad // tm

    kind = _device_kind()
    # bf16 tanh/exp only where the VPU/EUP has a bf16 path (v6e / v7x).
    bf16_eltwise = ("v6" in kind) or ("v7" in kind) or ("7x" in kind)
    eltwise_dtype = jnp.bfloat16 if bf16_eltwise else jnp.float32
    # v7x has 2 TensorCores per chip: shard batch tiles across them when there
    # is more than one grid step.
    is_v7x = ("v7" in kind) or ("7x" in kind)
    dim_sems = (pltpu.CORE_PARALLEL,) if (is_v7x and grid_steps >= 2) \
        else ("parallel",)

    # weights/biases: constant block index -> fetched once, VMEM-resident.
    resident = lambda shape: pl.BlockSpec(shape, lambda i: (0,) * len(shape))

    probs = pl.pallas_call(
        functools.partial(policy_mlp_kernel, eltwise_dtype=eltwise_dtype),
        out_shape=jax.ShapeDtypeStruct((b_pad, out_dim), jnp.float32),
        grid=(grid_steps,),
        in_specs=[
            pl.BlockSpec((tm, in_dim), lambda i: (i, 0)),   # x: tiled on batch
            resident(w1.shape), resident(b1.shape),
            resident(w2.shape), resident(b2.shape),
            resident(w3.shape), resident(b3.shape),
        ],
        out_specs=pl.BlockSpec((tm, out_dim), lambda i: (i, 0)),
        compiler_params=pltpu.CompilerParams(dimension_semantics=dim_sems),
    )(x, w1, b1, w2, b2, w3, b3)

    return probs[:B] if b_pad != B else probs


def init_params(key, input_dim=4, hidden_dim=128, output_dim=2):
    """Deterministic init matching torch.nn.Linear default (uniform +-1/sqrt(fan_in))."""
    ks = jax.random.split(key, 6)

    def linear(kw, kb, fan_in, fan_out):
        bound = 1.0 / jnp.sqrt(fan_in)
        w = jax.random.uniform(kw, (fan_in, fan_out), jnp.float32, -bound, bound)
        b = jax.random.uniform(kb, (1, fan_out), jnp.float32, -bound, bound)
        return w, b

    w1, b1 = linear(ks[0], ks[1], input_dim, hidden_dim)
    w2, b2 = linear(ks[2], ks[3], hidden_dim, hidden_dim)
    w3, b3 = linear(ks[4], ks[5], hidden_dim, output_dim)
    return (w1, b1, w2, b2, w3, b3)


if __name__ == "__main__":
    key = jax.random.PRNGKey(0)
    k_params, k_x1, k_x2 = jax.random.split(key, 3)

    input_dim, hidden_dim, output_dim = 4, 128, 2
    params = init_params(k_params, input_dim, hidden_dim, output_dim)
    prepared = prepare_params(params)   # hoisted weight prep (done once)

    def ref_forward(x):
        w1, b1, w2, b2, w3, b3 = params
        h = jnp.tanh(x @ w1 + b1)
        h = jnp.tanh(h @ w2 + b2)
        return jax.nn.softmax(h @ w3 + b3, axis=-1)

    # --- small aligned batch (single grid step) ------------------------------
    x1 = jax.random.normal(k_x1, (8, input_dim), dtype=jnp.float32)
    p1 = jax.block_until_ready(policy_forward(x1, prepared))
    assert p1.shape == (8, output_dim)
    assert bool(jnp.all(jnp.abs(jnp.sum(p1, axis=-1) - 1.0) < 1e-3))
    assert bool(jnp.all(jnp.abs(p1 - ref_forward(x1)) < 2e-2))   # bf16 matmuls

    # --- unaligned batch exercising multi-step grid + batch padding/slice ----
    x2 = jax.random.normal(k_x2, (100, input_dim), dtype=jnp.float32)
    p2 = jax.block_until_ready(policy_forward(x2, prepared, block_batch=64))
    assert p2.shape == (100, output_dim)
    assert bool(jnp.all(jnp.abs(jnp.sum(p2, axis=-1) - 1.0) < 1e-3))
    assert bool(jnp.all(jnp.abs(p2 - ref_forward(x2)) < 2e-2))

    print("KERNEL_OK")
</pallas_src>

<mosaic_0001>
module attributes {stable_mosaic.version = 11 : i64} {
  func.func @policy_mlp_kernel(%arg0: i32, %arg1: memref<8x4xf32, #tpu.memory_space<vmem>>, %arg2: memref<4x128xbf16, #tpu.memory_space<vmem>>, %arg3: memref<1x128xf32, #tpu.memory_space<vmem>>, %arg4: memref<128x128xbf16, #tpu.memory_space<vmem>>, %arg5: memref<1x128xf32, #tpu.memory_space<vmem>>, %arg6: memref<128x2xbf16, #tpu.memory_space<vmem>>, %arg7: memref<1x2xf32, #tpu.memory_space<vmem>>, %arg8: memref<8x2xf32, #tpu.memory_space<vmem>>) attributes {dimension_semantics = [#tpu.dimension_semantics<parallel>], iteration_bounds = array<i64: 1>, scalar_prefetch = 0 : i64, scratch_operands = 0 : i64, tpu.core_type = #tpu.core_type<tc>, window_params = [{transform_indices = @transform_0, window_bounds = array<i64: 8, 4>}, {pipeline_mode = #tpu.pipeline_mode<synchronous>, transform_indices = @transform_1, window_bounds = array<i64: 4, 128>}, {pipeline_mode = #tpu.pipeline_mode<synchronous>, transform_indices = @transform_2, window_bounds = array<i64: 1, 128>}, {pipeline_mode = #tpu.pipeline_mode<synchronous>, transform_indices = @transform_3, window_bounds = array<i64: 128, 128>}, {pipeline_mode = #tpu.pipeline_mode<synchronous>, transform_indices = @transform_4, window_bounds = array<i64: 1, 128>}, {pipeline_mode = #tpu.pipeline_mode<synchronous>, transform_indices = @transform_5, window_bounds = array<i64: 128, 2>}, {pipeline_mode = #tpu.pipeline_mode<synchronous>, transform_indices = @transform_6, window_bounds = array<i64: 1, 2>}, {transform_indices = @transform_7, window_bounds = array<i64: 8, 2>}]} {
    %c0 = arith.constant 0 : index
    %c0_0 = arith.constant 0 : index
    %0 = vector.load %arg1[%c0, %c0_0] : memref<8x4xf32, #tpu.memory_space<vmem>>, vector<8x4xf32>
    %1 = arith.truncf %0 : vector<8x4xf32> to vector<8x4xbf16>
    %c0_1 = arith.constant 0 : index
    %c0_2 = arith.constant 0 : index
    %2 = vector.load %arg2[%c0_1, %c0_2] : memref<4x128xbf16, #tpu.memory_space<vmem>>, vector<4x128xbf16>
    %cst = arith.constant dense<0.000000e+00> : vector<8x128xf32>
    %3 = tpu.matmul %1, %2, %cst {dimension_numbers = #tpu.dot_dimension_numbers<[1], [0], [0], [1], [0, 0, 1, 1], [], []>} : vector<8x4xbf16>, vector<4x128xbf16>, vector<8x128xf32> -> vector<8x128xf32>
    %c0_3 = arith.constant 0 : index
    %c0_4 = arith.constant 0 : index
    %4 = vector.load %arg3[%c0_3, %c0_4] : memref<1x128xf32, #tpu.memory_space<vmem>>, vector<1x128xf32>
    %5 = vector.broadcast %4 : vector<1x128xf32> to vector<8x128xf32>
    %6 = arith.addf %3, %5 : vector<8x128xf32>
    %7 = math.tanh %6 : vector<8x128xf32>
    %8 = arith.truncf %7 : vector<8x128xf32> to vector<8x128xbf16>
    %c0_5 = arith.constant 0 : index
    %c0_6 = arith.constant 0 : index
    %9 = vector.load %arg4[%c0_5, %c0_6] : memref<128x128xbf16, #tpu.memory_space<vmem>>, vector<128x128xbf16>
    %cst_7 = arith.constant dense<0.000000e+00> : vector<8x128xf32>
    %10 = tpu.matmul %8, %9, %cst_7 {dimension_numbers = #tpu.dot_dimension_numbers<[1], [0], [0], [1], [0, 0, 1, 1], [], []>} : vector<8x128xbf16>, vector<128x128xbf16>, vector<8x128xf32> -> vector<8x128xf32>
    %c0_8 = arith.constant 0 : index
    %c0_9 = arith.constant 0 : index
    %11 = vector.load %arg5[%c0_8, %c0_9] : memref<1x128xf32, #tpu.memory_space<vmem>>, vector<1x128xf32>
    %12 = vector.broadcast %11 : vector<1x128xf32> to vector<8x128xf32>
    %13 = arith.addf %10, %12 : vector<8x128xf32>
    %14 = math.tanh %13 : vector<8x128xf32>
    %15 = arith.truncf %14 : vector<8x128xf32> to vector<8x128xbf16>
    %c0_10 = arith.constant 0 : index
    %c0_11 = arith.constant 0 : index
    %16 = vector.load %arg6[%c0_10, %c0_11] : memref<128x2xbf16, #tpu.memory_space<vmem>>, vector<128x2xbf16>
    %cst_12 = arith.constant dense<0.000000e+00> : vector<8x2xf32>
    %17 = tpu.matmul %15, %16, %cst_12 {dimension_numbers = #tpu.dot_dimension_numbers<[1], [0], [0], [1], [0, 0, 1, 1], [], []>} : vector<8x128xbf16>, vector<128x2xbf16>, vector<8x2xf32> -> vector<8x2xf32>
    %c0_13 = arith.constant 0 : index
    %c0_14 = arith.constant 0 : index
    %18 = vector.load %arg7[%c0_13, %c0_14] : memref<1x2xf32, #tpu.memory_space<vmem>>, vector<1x2xf32>
    %19 = vector.broadcast %18 : vector<1x2xf32> to vector<8x2xf32>
    %20 = arith.addf %17, %19 : vector<8x2xf32>
    %cst_15 = arith.constant dense<0xFF800000> : vector<8xf32>
    %21 = vector.multi_reduction <maximumf>, %20, %cst_15 [1] : vector<8x2xf32> to vector<8xf32>
    %22 = vector.shape_cast %21 : vector<8xf32> to vector<8x1xf32>
    %23 = vector.broadcast %22 : vector<8x1xf32> to vector<8x2xf32>
    %24 = arith.subf %20, %23 : vector<8x2xf32>
    %25 = math.exp %24 : vector<8x2xf32>
    %cst_16 = arith.constant dense<0.000000e+00> : vector<8xf32>
    %26 = vector.multi_reduction <add>, %25, %cst_16 [1] : vector<8x2xf32> to vector<8xf32>
    %27 = vector.shape_cast %26 : vector<8xf32> to vector<8x1xf32>
    %28 = vector.broadcast %27 : vector<8x1xf32> to vector<8x2xf32>
    %29 = arith.divf %25, %28 : vector<8x2xf32>
    %c0_17 = arith.constant 0 : index
    %c0_18 = arith.constant 0 : index
    %30 = vector.load %arg8[%c0_17, %c0_18] : memref<8x2xf32, #tpu.memory_space<vmem>>, vector<8x2xf32>
    tpu.vector_store %arg8[%c0_17, %c0_18], %29 {strides = array<i32>} : memref<8x2xf32, #tpu.memory_space<vmem>>, vector<8x2xf32>,
    return
  }
  func.func @transform_0(%arg0: i32) -> (i32, i32) {
    %c0_i32 = arith.constant 0 : i32
    %c0_i32_0 = arith.constant 0 : i32
    return %arg0, %c0_i32 : i32, i32
  }
  func.func @transform_1(%arg0: i32) -> (i32, i32) {
    %c0_i32 = arith.constant 0 : i32
    %c0_i32_0 = arith.constant 0 : i32
    %c0_i32_1 = arith.constant 0 : i32
    return %c0_i32, %c0_i32_0 : i32, i32
  }
  func.func @transform_2(%arg0: i32) -> (i32, i32) {
    %c0_i32 = arith.constant 0 : i32
    %c0_i32_0 = arith.constant 0 : i32
    %c0_i32_1 = arith.constant 0 : i32
    return %c0_i32, %c0_i32_0 : i32, i32
  }
  func.func @transform_3(%arg0: i32) -> (i32, i32) {
    %c0_i32 = arith.constant 0 : i32
    %c0_i32_0 = arith.constant 0 : i32
    %c0_i32_1 = arith.constant 0 : i32
    return %c0_i32, %c0_i32_0 : i32, i32
  }
  func.func @transform_4(%arg0: i32) -> (i32, i32) {
    %c0_i32 = arith.constant 0 : i32
    %c0_i32_0 = arith.constant 0 : i32
    %c0_i32_1 = arith.constant 0 : i32
    return %c0_i32, %c0_i32_0 : i32, i32
  }
  func.func @transform_5(%arg0: i32) -> (i32, i32) {
    %c0_i32 = arith.constant 0 : i32
    %c0_i32_0 = arith.constant 0 : i32
    %c0_i32_1 = arith.constant 0 : i32
    return %c0_i32, %c0_i32_0 : i32, i32
  }
  func.func @transform_6(%arg0: i32) -> (i32, i32) {
    %c0_i32 = arith.constant 0 : i32
    %c0_i32_0 = arith.constant 0 : i32
    %c0_i32_1 = arith.constant 0 : i32
    return %c0_i32, %c0_i32_0 : i32, i32
  }
  func.func @transform_7(%arg0: i32) -> (i32, i32) {
    %c0_i32 = arith.constant 0 : i32
    %c0_i32_0 = arith.constant 0 : i32
    return %arg0, %c0_i32 : i32, i32
  }
}

</mosaic_0001>

<llo_original>
// kernel: tpu_custom_call.1
$region0: #{tpu_custom_call.1}
  #allocation0 [shape = 'u32[]', space=smem, size = 0x4, offset = 0x4, fixed_abs, tag = 'smem constant byte address 0x4 - core index']
  #allocation1 [shape = 'u32[144,128]{1,0:T(1,128)}', space=vmem, size = 0x12000, scoped, tag = 'internal scratch']
  %s0 = inlined_call_operand.vmem [shape: f32[8,4], index: 0, kind: input, shape index: {}]
  %s1 = inlined_call_operand.vmem [shape: bf16[4,128], index: 1, kind: input, shape index: {}]
  %s2 = inlined_call_operand.vmem [shape: f32[1,128], index: 2, kind: input, shape index: {}]
  %s3 = inlined_call_operand.vmem [shape: bf16[128,128], index: 3, kind: input, shape index: {}]
  %s4 = inlined_call_operand.vmem [shape: f32[1,128], index: 4, kind: input, shape index: {}]
  %s5 = inlined_call_operand.vmem [shape: bf16[128,2], index: 5, kind: input, shape index: {}]
  %s6 = inlined_call_operand.vmem [shape: f32[1,2], index: 6, kind: input, shape index: {}]
  %s7 = inlined_call_operand.vmem [shape: f32[8,2], index: 7, kind: output, shape index: {}]
  %s8 = sld [smem:[#allocation0]]
  $region38: #{tpu_custom_call.1} parent=0
    _
  %s10 = ssub.s32 1, %s8
  %s11 = scalar_select 0, %s10, %s8
  // Predicated region
  $region2: #{tpu_custom_call.1} parent=0 // pred_check
    _
  $region3: #{tpu_custom_call.1} parent=0 // pred_check_branch
    %13 = sbr.rel (0) target = $region5
  $region4: #{tpu_custom_call.1} parent=0 // pred_region
    _
  $region5: #{tpu_custom_call.1} parent=0 // pred_fallthru
    _
  // Predicated region
  $region6: #{tpu_custom_call.1} parent=0 // pred_check
    _
  $region7: #{tpu_custom_call.1} parent=0 // pred_check_branch
    %15 = sbr.rel (0) target = $region9
  $region8: #{tpu_custom_call.1} parent=0 // pred_region
    _
  $region9: #{tpu_custom_call.1} parent=0 // pred_fallthru
    _
  // Predicated region
  $region10: #{tpu_custom_call.1} parent=0 // pred_check
    _
  $region11: #{tpu_custom_call.1} parent=0 // pred_check_branch
    %17 = sbr.rel (0) target = $region13
  $region12: #{tpu_custom_call.1} parent=0 // pred_region
    _
  $region13: #{tpu_custom_call.1} parent=0 // pred_fallthru
    _
  // Predicated region
  $region14: #{tpu_custom_call.1} parent=0 // pred_check
    _
  $region15: #{tpu_custom_call.1} parent=0 // pred_check_branch
    %19 = sbr.rel (0) target = $region17
  $region16: #{tpu_custom_call.1} parent=0 // pred_region
    _
  $region17: #{tpu_custom_call.1} parent=0 // pred_fallthru
    _
  // Predicated region
  $region18: #{tpu_custom_call.1} parent=0 // pred_check
    _
  $region19: #{tpu_custom_call.1} parent=0 // pred_check_branch
    %21 = sbr.rel (0) target = $region21
  $region20: #{tpu_custom_call.1} parent=0 // pred_region
    _
  $region21: #{tpu_custom_call.1} parent=0 // pred_fallthru
    _
  // Predicated region
  $region22: #{tpu_custom_call.1} parent=0 // pred_check
    _
  $region23: #{tpu_custom_call.1} parent=0 // pred_check_branch
    %23 = sbr.rel (0) target = $region25
  $region24: #{tpu_custom_call.1} parent=0 // pred_region
    _
  $region25: #{tpu_custom_call.1} parent=0 // pred_fallthru
    _
  // Predicated region
  $region26: #{tpu_custom_call.1} parent=0 // pred_check
    _
  $region27: #{tpu_custom_call.1} parent=0 // pred_check_branch
    %25 = sbr.rel (0) target = $region29
  $region28: #{tpu_custom_call.1} parent=0 // pred_region
    _
  $region29: #{tpu_custom_call.1} parent=0 // pred_fallthru
    _
  %v27 = vld [vmem:[%s0] sm:$0xff]
  %v28 = vpack.c.bf16 %v27, %v27
  %v29 = vld [vmem:[%s1] sm:$0x3]
  %v30 = vld [vmem:[%s2] sm:$0x1]
  %v32 = vlaneseq
  %v33 = vshrl.u32 %v32, 7
  %v34 = vsub.s32 0, %v33
  %v35 = vrot.slane %v30, %v34
  %vm37 = vcmask 31744
  %v39 = vsel %vm37, %v28, 0
  %vm41 = vcmask 1041408
  %v43 = vsel %vm41, %v29, 0
  %45 = vmatprep.subr.bf16.mxu0 0
  %46 = vmatpush1.bf16.msra.mxu0 %v43
  %47 = vmatprep.subr.bf16.mxu0 0
  %48 = vmatpush1.bf16.msra.mxu0 0
  %49 = vmatprep.subr.bf16.mxu0 0
  %50 = vmatpush1.bf16.msra.mxu0 0
  %51 = vmatprep.subr.bf16.mxu0 0
  %52 = vmatpush1.bf16.msra.mxu0 0
  %53 = vmatprep.subr.bf16.mxu0 0
  %54 = vmatpush1.bf16.msra.mxu0 0
  %55 = vmatprep.subr.bf16.mxu0 0
  %56 = vmatpush1.bf16.msra.mxu0 0
  %57 = vmatprep.subr.bf16.mxu0 0
  %58 = vmatpush1.bf16.msra.mxu0 0
  %59 = vmatprep.subr.bf16.mxu0 0
  %60 = vmatpush1.bf16.msra.mxu0 0
  %61 = vmatprep.subr.bf16.mxu0 0
  %62 = vmatpush1.bf16.msra.mxu0 0
  %63 = vmatprep.subr.bf16.mxu0 0
  %64 = vmatpush1.bf16.msra.mxu0 0
  %65 = vmatprep.subr.bf16.mxu0 0
  %66 = vmatpush1.bf16.msra.mxu0 0
  %67 = vmatprep.subr.bf16.mxu0 0
  %68 = vmatpush1.bf16.msra.mxu0 0
  %69 = vmatprep.subr.bf16.mxu0 0
  %70 = vmatpush1.bf16.msra.mxu0 0
  %71 = vmatprep.subr.bf16.mxu0 0
  %72 = vmatpush1.bf16.msra.mxu0 0
  %73 = vmatprep.subr.bf16.mxu0 0
  %74 = vmatpush1.bf16.msra.mxu0 0
  %75 = vmatprep.subr.bf16.mxu0 0
  %76 = vmatpush1.bf16.msra.mxu0 0
  %77 = vmatprep.mubr.bf16.mxu0 0
  %78 = vmatmul.mubr.bf16.gmra.mrb[0].mxu0 %v39
  %v79 = vpop.f32.mrb[0].mxu0
  %v80 = vadd.f32 %v35, %v79
  %v81 = vpop.f32.mrb[0].mxu0
  %v82 = vpop.f32.mrb[0].mxu0
  %v83 = vpop.f32.mrb[0].mxu0
  %84 = vdwg.mxu0
  %v85 = vtanh.pop %v80
  %v86 = vpack.c.bf16 %v85, %v85
  %v87 = vld [vmem:[%s3] sm:$0xf]
  %v88 = vld [vmem:[%s3 + $0x4] sm:$0xf]
  %v89 = vld [vmem:[%s3 + $0x8] sm:$0xf]
  %v90 = vld [vmem:[%s3 + $0xc] sm:$0xf]
  %v91 = vld [vmem:[%s3 + $0x10] sm:$0xf]
  %v92 = vld [vmem:[%s3 + $0x14] sm:$0xf]
  %v93 = vld [vmem:[%s3 + $0x18] sm:$0xf]
  %v94 = vld [vmem:[%s3 + $0x1c] sm:$0xf]
  %v95 = vld [vmem:[%s3 + $0x20] sm:$0xf]
  %v96 = vld [vmem:[%s3 + $0x24] sm:$0xf]
  %v97 = vld [vmem:[%s3 + $0x28] sm:$0xf]
  %v98 = vld [vmem:[%s3 + $0x2c] sm:$0xf]
  %v99 = vld [vmem:[%s3 + $0x30] sm:$0xf]
  %v100 = vld [vmem:[%s3 + $0x34] sm:$0xf]
  %v101 = vld [vmem:[%s3 + $0x38] sm:$0xf]
  %v102 = vld [vmem:[%s3 + $0x3c] sm:$0xf]
  %v103 = vld [vmem:[%s4] sm:$0x1]
  %v105 = vlaneseq
  %v106 = vshrl.u32 %v105, 7
  %v107 = vsub.s32 0, %v106
  %v108 = vrot.slane %v103, %v107
  %v126 = vunpack.c.l.b16 %v87
  %v127 = vunpack.c.l.b16 %v88
  %v128 = vunpack.c.l.b16 %v89
  %v129 = vunpack.c.l.b16 %v90
  %v130 = vunpack.c.l.b16 %v91
  %v131 = vunpack.c.l.b16 %v92
  %v132 = vunpack.c.l.b16 %v93
  %v133 = vunpack.c.l.b16 %v94
  %v134 = vunpack.c.l.b16 %v95
  %v135 = vunpack.c.l.b16 %v96
  %v136 = vunpack.c.l.b16 %v97
  %v137 = vunpack.c.l.b16 %v98
  %v138 = vunpack.c.l.b16 %v99
  %v139 = vunpack.c.l.b16 %v100
  %v140 = vunpack.c.l.b16 %v101
  %v141 = vunpack.c.l.b16 %v102
  %v142 = vpack.c.b16 %v127, %v126
  %v143 = vpack.c.b16 %v129, %v128
  %v144 = vpack.c.b16 %v131, %v130
  %v145 = vpack.c.b16 %v133, %v132
  %v146 = vpack.c.b16 %v135, %v134
  %v147 = vpack.c.b16 %v137, %v136
  %v148 = vpack.c.b16 %v139, %v138
  %v149 = vpack.c.b16 %v141, %v140
  %158 = vmatprep.subr.bf16.mxu0 0
  %159 = vmatpush1.bf16.msra.mxu0 %v142
  %160 = vmatprep.subr.bf16.mxu0 0
  %161 = vmatpush1.bf16.msra.mxu0 %v143
  %162 = vmatprep.subr.bf16.mxu0 0
  %163 = vmatpush1.bf16.msra.mxu0 %v144
  %164 = vmatprep.subr.bf16.mxu0 0
  %165 = vmatpush1.bf16.msra.mxu0 %v145
  %166 = vmatprep.subr.bf16.mxu0 0
  %167 = vmatpush1.bf16.msra.mxu0 %v146
  %168 = vmatprep.subr.bf16.mxu0 0
  %169 = vmatpush1.bf16.msra.mxu0 %v147
  %170 = vmatprep.subr.bf16.mxu0 0
  %171 = vmatpush1.bf16.msra.mxu0 %v148
  %172 = vmatprep.subr.bf16.mxu0 0
  %173 = vmatpush1.bf16.msra.mxu0 %v149
  %174 = vmatprep.subr.bf16.mxu0 0
  %175 = vmatpush1.bf16.msra.mxu0 0
  %176 = vmatprep.subr.bf16.mxu0 0
  %177 = vmatpush1.bf16.msra.mxu0 0
  %178 = vmatprep.subr.bf16.mxu0 0
  %179 = vmatpush1.bf16.msra.mxu0 0
  %180 = vmatprep.subr.bf16.mxu0 0
  %181 = vmatpush1.bf16.msra.mxu0 0
  %182 = vmatprep.subr.bf16.mxu0 0
  %183 = vmatpush1.bf16.msra.mxu0 0
  %184 = vmatprep.subr.bf16.mxu0 0
  %185 = vmatpush1.bf16.msra.mxu0 0
  %186 = vmatprep.subr.bf16.mxu0 0
  %187 = vmatpush1.bf16.msra.mxu0 0
  %188 = vmatprep.subr.bf16.mxu0 0
  %189 = vmatpush1.bf16.msra.mxu0 0
  %190 = vmatprep.mubr.bf16.mxu0 0
  %191 = vmatmul.mubr.bf16.gmra.mrb[0].mxu0 %v86
  %v192 = vpop.f32.mrb[0].mxu0
  %v193 = vadd.f32 %v108, %v192
  %v194 = vpop.f32.mrb[0].mxu0
  %v195 = vpop.f32.mrb[0].mxu0
  %v196 = vpop.f32.mrb[0].mxu0
  %197 = vdwg.mxu0
  %v198 = vtanh.pop %v193
  %v199 = vpack.c.bf16 %v198, %v198
  %v200 = vld [vmem:[%s5] sm:$0xf]
  %v201 = vld [vmem:[%s5 + $0x4] sm:$0xf]
  %v202 = vld [vmem:[%s5 + $0x8] sm:$0xf]
  %v203 = vld [vmem:[%s5 + $0xc] sm:$0xf]
  %v204 = vld [vmem:[%s5 + $0x10] sm:$0xf]
  %v205 = vld [vmem:[%s5 + $0x14] sm:$0xf]
  %v206 = vld [vmem:[%s5 + $0x18] sm:$0xf]
  %v207 = vld [vmem:[%s5 + $0x1c] sm:$0xf]
  %v208 = vld [vmem:[%s5 + $0x20] sm:$0xf]
  %v209 = vld [vmem:[%s5 + $0x24] sm:$0xf]
  %v210 = vld [vmem:[%s5 + $0x28] sm:$0xf]
  %v211 = vld [vmem:[%s5 + $0x2c] sm:$0xf]
  %v212 = vld [vmem:[%s5 + $0x30] sm:$0xf]
  %v213 = vld [vmem:[%s5 + $0x34] sm:$0xf]
  %v214 = vld [vmem:[%s5 + $0x38] sm:$0xf]
  %v215 = vld [vmem:[%s5 + $0x3c] sm:$0xf]
  %v216 = vld [vmem:[%s6] sm:$0x1]
  %v218 = vlaneseq
  %v219 = vshrl.u32 %v218, 7
  %v220 = vsub.s32 0, %v219
  %v221 = vrot.slane %v216, %v220
  %v239 = vunpack.c.l.b16 %v200
  %v240 = vunpack.c.l.b16 %v201
  %v241 = vunpack.c.l.b16 %v202
  %v242 = vunpack.c.l.b16 %v203
  %v243 = vunpack.c.l.b16 %v204
  %v244 = vunpack.c.l.b16 %v205
  %v245 = vunpack.c.l.b16 %v206
  %v246 = vunpack.c.l.b16 %v207
  %v247 = vunpack.c.l.b16 %v208
  %v248 = vunpack.c.l.b16 %v209
  %v249 = vunpack.c.l.b16 %v210
  %v250 = vunpack.c.l.b16 %v211
  %v251 = vunpack.c.l.b16 %v212
  %v252 = vunpack.c.l.b16 %v213
  %v253 = vunpack.c.l.b16 %v214
  %v254 = vunpack.c.l.b16 %v215
  %v255 = vpack.c.b16 %v240, %v239
  %v256 = vpack.c.b16 %v242, %v241
  %v257 = vpack.c.b16 %v244, %v243
  %v258 = vpack.c.b16 %v246, %v245
  %v259 = vpack.c.b16 %v248, %v247
  %v260 = vpack.c.b16 %v250, %v249
  %v261 = vpack.c.b16 %v252, %v251
  %v262 = vpack.c.b16 %v254, %v253
  %271 = vmatprep.subr.bf16.mxu0 0
  %272 = vmatpush1.bf16.msra.mxu0 %v255
  %273 = vmatprep.subr.bf16.mxu0 0
  %274 = vmatpush1.bf16.msra.mxu0 %v256
  %275 = vmatprep.subr.bf16.mxu0 0
  %276 = vmatpush1.bf16.msra.mxu0 %v257
  %277 = vmatprep.subr.bf16.mxu0 0
  %278 = vmatpush1.bf16.msra.mxu0 %v258
  %279 = vmatprep.subr.bf16.mxu0 0
  %280 = vmatpush1.bf16.msra.mxu0 %v259
  %281 = vmatprep.subr.bf16.mxu0 0
  %282 = vmatpush1.bf16.msra.mxu0 %v260
  %283 = vmatprep.subr.bf16.mxu0 0
  %284 = vmatpush1.bf16.msra.mxu0 %v261
  %285 = vmatprep.subr.bf16.mxu0 0
  %286 = vmatpush1.bf16.msra.mxu0 %v262
  %287 = vmatprep.subr.bf16.mxu0 0
  %288 = vmatpush1.bf16.msra.mxu0 0
  %289 = vmatprep.subr.bf16.mxu0 0
  %290 = vmatpush1.bf16.msra.mxu0 0
  %291 = vmatprep.subr.bf16.mxu0 0
  %292 = vmatpush1.bf16.msra.mxu0 0
  %293 = vmatprep.subr.bf16.mxu0 0
  %294 = vmatpush1.bf16.msra.mxu0 0
  %295 = vmatprep.subr.bf16.mxu0 0
  %296 = vmatpush1.bf16.msra.mxu0 0
  %297 = vmatprep.subr.bf16.mxu0 0
  %298 = vmatpush1.bf16.msra.mxu0 0
  %299 = vmatprep.subr.bf16.mxu0 0
  %300 = vmatpush1.bf16.msra.mxu0 0
  %301 = vmatprep.subr.bf16.mxu0 0
  %302 = vmatpush1.bf16.msra.mxu0 0
  %303 = vmatprep.mubr.bf16.mxu0 0
  %304 = vmatmul.mubr.bf16.gmra.mrb[0].mxu0 %v199
  %v305 = vpop.f32.mrb[0].mxu0
  %v306 = vadd.f32 %v221, %v305
  %v307 = vpop.f32.mrb[0].mxu0
  %v308 = vpop.f32.mrb[0].mxu0
  %v309 = vpop.f32.mrb[0].mxu0
  %310 = vdwg.mxu0
  %vm311 = vcmask 15360
  %v312 = vsel %vm311, %v306, -inf
  %313 = vmax.xlane.f32.xlu0 %v312
  %v314 = vpop.xlane.xlu0 %313
  %v315 = vsub.f32 %v306, %v314
  %v316 = vmul.f32 %v315, 1.442695
  %v317 = vpow.pop %v316
  %v318 = vsel %vm311, %v317, 0.0
  %319 = vadd.xlane.f32.xlu0 %v318
  %v320 = vpop.xlane.xlu0 %319
  %v321 = vrcp.pop %v320
  %v322 = vmul.f32 %v317, %v321
  %323 = vst.msk [vmem:[%s7] sm:$0xff] %vm311, %v322
  // Predicated region
  $region30: #{tpu_custom_call.1} parent=0 // pred_check
    _
  $region31: #{tpu_custom_call.1} parent=0 // pred_check_branch
    %325 = sbr.rel (0) target = $region33
  $region32: #{tpu_custom_call.1} parent=0 // pred_region
    _
  $region33: #{tpu_custom_call.1} parent=0 // pred_fallthru
    _
  // Predicated region
  $region34: #{tpu_custom_call.1} parent=0 // pred_check
    _
  $region35: #{tpu_custom_call.1} parent=0 // pred_check_branch
    %327 = sbr.rel (0) target = $region37
  $region36: #{tpu_custom_call.1} parent=0 // pred_region
    _
  $region37: #{tpu_custom_call.1} parent=0 // pred_fallthru
    _

</llo_original>
